<compile_context>
chip_gen: v5e
topology: v5e:2x2
jax: 0.10.0
libtpu: 0.0.40
codegen_flags: <defaults>
</compile_context>

<pallas_src>
import functools

import jax
import jax.numpy as jnp
from jax import lax
from jax.experimental import pallas as pl
from jax.experimental.pallas import tpu as pltpu


def cbam_kernel(x_ref, w1t_ref, w2t_ref, cma_ref, cmm_ref, o_ref, *, nb):
    """One grid step: `nb` images, laid out as (nb, C, H*W) with H*W on lanes."""
    x = x_ref[...].astype(jnp.float32)                          # (nb, C, HW)

    # ---------------- Channel attention ----------------
    avg_c = jnp.mean(x, axis=2)                                 # (nb, C)
    max_c = jnp.max(x, axis=2)                                  # (nb, C)
    pooled = jnp.concatenate([avg_c, max_c], axis=0)            # (2*nb, C)

    # Fused MLP: one matmul pair serves both pooled paths.
    hidden = jnp.maximum(
        jnp.dot(pooled, w1t_ref[...], preferred_element_type=jnp.float32),
        0.0)                                                    # (2*nb, Cr)
    att = jnp.dot(hidden, w2t_ref[...],
                  preferred_element_type=jnp.float32)           # (2*nb, C)
    ca = jax.nn.sigmoid(att[:nb] + att[nb:])                    # (nb, C)

    out1 = x * ca[:, :, None]                                   # channel-attended x

    # ---------------- Spatial attention ----------------
    avg_s = jnp.mean(out1, axis=1)                              # (nb, HW)
    max_s = jnp.max(out1, axis=1)                               # (nb, HW)

    # 7x7 "same" conv over (H, W) as two dense matmuls on the otherwise-idle
    # MXU (one operator per pooled-stat channel); avoids a lane-axis concat.
    conv = (jnp.dot(avg_s, cma_ref[...], preferred_element_type=jnp.float32)
            + jnp.dot(max_s, cmm_ref[...], preferred_element_type=jnp.float32))
    sa = jax.nn.sigmoid(conv)                                   # (nb, HW)

    o_ref[...] = (out1 * sa[:, None, :]).astype(o_ref.dtype)


def conv7x7_as_matrices(wk, H, W):
    """Rewrite the 2-in/1-out KxK 'same' conv (cross-correlation, zero pad) as
    two dense operators M_avg, M_max of shape (H*W, H*W) such that
    conv(cat)[n].reshape(HW) == avg_flat[n] @ M_avg + max_flat[n] @ M_max."""
    K = wk.shape[-1]
    P = K // 2
    iy = jnp.arange(H)[:, None] - jnp.arange(H)[None, :] + P    # [py(in), qy(out)]
    jx = jnp.arange(W)[:, None] - jnp.arange(W)[None, :] + P    # [px(in), qx(out)]
    valid = (((iy >= 0) & (iy < K))[:, :, None, None]
             & ((jx >= 0) & (jx < K))[None, None, :, :])        # (H, H, W, W)
    tap = wk[0][:, jnp.clip(iy, 0, K - 1)[:, :, None, None],
                jnp.clip(jx, 0, K - 1)[None, None, :, :]]       # (2, H, H, W, W)
    m = jnp.where(valid[None], tap, 0.0)                        # [c, py, qy, px, qx]
    m = m.transpose(0, 1, 3, 2, 4).reshape(2, H * W, H * W)     # [c, (py,px), (qy,qx)]
    m = m.astype(jnp.float32)
    return m[0], m[1]


def cbam_pallas(x, w1, w2, wk, *, block_n=8):
    """x: (N, C, H, W) f32; w1: (C//r, C); w2: (C, C//r); wk: (1, 2, 7, 7)."""
    N, C, H, W = x.shape
    Cr = w1.shape[0]
    HW = H * W

    nb = min(N, block_n)
    while N % nb:            # pick a divisor of N so blocks tile exactly
        nb -= 1

    xr = x.reshape(N, C, HW)                                    # lane-dense layout
    w1t = jnp.asarray(w1, jnp.float32).T                        # (C, Cr)
    w2t = jnp.asarray(w2, jnp.float32).T                        # (Cr, C)
    cma, cmm = conv7x7_as_matrices(jnp.asarray(wk, jnp.float32), H, W)

    kernel = functools.partial(cbam_kernel, nb=nb)

    flops = N * (6 * C * HW + 4 * HW * HW + 8 * C * Cr)
    cost = pl.CostEstimate(
        flops=int(flops),
        transcendentals=int(N * (C + HW)),
        bytes_accessed=int(4 * (2 * N * C * HW + 2 * C * Cr + 2 * HW * HW)),
    )

    out = pl.pallas_call(
        kernel,
        out_shape=jax.ShapeDtypeStruct((N, C, HW), x.dtype),
        grid=(N // nb,),
        in_specs=[
            pl.BlockSpec((nb, C, HW), lambda n: (n, 0, 0)),
            pl.BlockSpec((C, Cr), lambda n: (0, 0)),
            pl.BlockSpec((Cr, C), lambda n: (0, 0)),
            pl.BlockSpec((HW, HW), lambda n: (0, 0)),
            pl.BlockSpec((HW, HW), lambda n: (0, 0)),
        ],
        out_specs=pl.BlockSpec((nb, C, HW), lambda n: (n, 0, 0)),
        compiler_params=pltpu.CompilerParams(
            dimension_semantics=("parallel",)),
        cost_estimate=cost,
    )(xr, w1t, w2t, cma, cmm)
    return out.reshape(N, C, H, W)


def cbam_reference(x, w1, w2, wk):
    """Pure-JAX reference matching the PyTorch forward."""
    # Channel attention
    avg = x.mean(axis=(2, 3))                                   # (N, C)
    mx = x.max(axis=(2, 3))                                     # (N, C)

    def mlp(p):
        return jnp.maximum(p @ w1.T, 0.0) @ w2.T                # (N, C)

    ca = jax.nn.sigmoid(mlp(avg) + mlp(mx))                     # (N, C)
    out1 = x * ca[:, :, None, None]

    # Spatial attention
    avg_s = out1.mean(axis=1, keepdims=True)
    max_s = out1.max(axis=1, keepdims=True)
    cat = jnp.concatenate([avg_s, max_s], axis=1)               # (N, 2, H, W)
    conv = lax.conv_general_dilated(
        cat, wk, window_strides=(1, 1), padding=[(3, 3), (3, 3)],
        dimension_numbers=("NCHW", "OIHW", "NCHW"))
    sa = jax.nn.sigmoid(conv)                                   # (N, 1, H, W)
    return out1 * sa


if __name__ == "__main__":
    # CBAM uses ratio=16, so channels must be >= 16 for a nonzero hidden dim.
    N, C, H, W = 2, 32, 16, 16
    ratio = 16
    Cr = C // ratio

    key = jax.random.PRNGKey(0)
    kx, k1, k2, k3 = jax.random.split(key, 4)
    x = jax.random.normal(kx, (N, C, H, W), dtype=jnp.float32)
    w1 = jax.random.normal(k1, (Cr, C), dtype=jnp.float32) * 0.2       # f1 1x1 conv weight
    w2 = jax.random.normal(k2, (C, Cr), dtype=jnp.float32) * 0.2       # f2 1x1 conv weight
    wk = jax.random.normal(k3, (1, 2, 7, 7), dtype=jnp.float32) * 0.1  # 7x7 spatial conv

    out = cbam_pallas(x, w1, w2, wk)
    out = jax.block_until_ready(out)

    ref = jax.block_until_ready(cbam_reference(x, w1, w2, wk))
    assert out.shape == (N, C, H, W)
    assert jnp.allclose(out, ref, atol=1e-4, rtol=1e-4)

    print("KERNEL_OK")
</pallas_src>

<mosaic_0001>
module attributes {stable_mosaic.version = 11 : i64} {
  func.func @cbam_kernel(%arg0: i32, %arg1: memref<2x32x256xf32, #tpu.memory_space<vmem>>, %arg2: memref<32x2xf32, #tpu.memory_space<vmem>>, %arg3: memref<2x32xf32, #tpu.memory_space<vmem>>, %arg4: memref<256x256xf32, #tpu.memory_space<vmem>>, %arg5: memref<256x256xf32, #tpu.memory_space<vmem>>, %arg6: memref<2x32x256xf32, #tpu.memory_space<vmem>>) attributes {dimension_semantics = [#tpu.dimension_semantics<parallel>], iteration_bounds = array<i64: 1>, scalar_prefetch = 0 : i64, scratch_operands = 0 : i64, tpu.core_type = #tpu.core_type<tc>, window_params = [{transform_indices = @transform_0, window_bounds = array<i64: 2, 32, 256>}, {pipeline_mode = #tpu.pipeline_mode<synchronous>, transform_indices = @transform_1, window_bounds = array<i64: 32, 2>}, {pipeline_mode = #tpu.pipeline_mode<synchronous>, transform_indices = @transform_2, window_bounds = array<i64: 2, 32>}, {pipeline_mode = #tpu.pipeline_mode<synchronous>, transform_indices = @transform_3, window_bounds = array<i64: 256, 256>}, {pipeline_mode = #tpu.pipeline_mode<synchronous>, transform_indices = @transform_4, window_bounds = array<i64: 256, 256>}, {transform_indices = @transform_5, window_bounds = array<i64: 2, 32, 256>}]} {
    %c0 = arith.constant 0 : index
    %c0_0 = arith.constant 0 : index
    %c0_1 = arith.constant 0 : index
    %0 = vector.load %arg1[%c0, %c0_0, %c0_1] : memref<2x32x256xf32, #tpu.memory_space<vmem>>, vector<2x32x256xf32>
    %cst = arith.constant dense<0.000000e+00> : vector<2x32xf32>
    %1 = vector.multi_reduction <add>, %0, %cst [2] : vector<2x32x256xf32> to vector<2x32xf32>
    %cst_2 = arith.constant 2.560000e+02 : f32
    %2 = vector.broadcast %cst_2 : f32 to vector<2x32xf32>
    %3 = arith.divf %1, %2 : vector<2x32xf32>
    %cst_3 = arith.constant dense<0xFF800000> : vector<2x32xf32>
    %4 = vector.multi_reduction <maximumf>, %0, %cst_3 [2] : vector<2x32x256xf32> to vector<2x32xf32>
    %5 = tpu.concatenate %3, %4 in 0 : vector<2x32xf32>, vector<2x32xf32> -> vector<4x32xf32>
    %c0_4 = arith.constant 0 : index
    %c0_5 = arith.constant 0 : index
    %6 = vector.load %arg2[%c0_4, %c0_5] : memref<32x2xf32, #tpu.memory_space<vmem>>, vector<32x2xf32>
    %cst_6 = arith.constant dense<0.000000e+00> : vector<4x2xf32>
    %7 = tpu.matmul %5, %6, %cst_6 {dimension_numbers = #tpu.dot_dimension_numbers<[1], [0], [0], [1], [0, 0, 1, 1], [], []>} : vector<4x32xf32>, vector<32x2xf32>, vector<4x2xf32> -> vector<4x2xf32>
    %cst_7 = arith.constant 0.000000e+00 : f32
    %8 = vector.broadcast %cst_7 : f32 to vector<4x2xf32>
    %9 = arith.maximumf %7, %8 : vector<4x2xf32>
    %c0_8 = arith.constant 0 : index
    %c0_9 = arith.constant 0 : index
    %10 = vector.load %arg3[%c0_8, %c0_9] : memref<2x32xf32, #tpu.memory_space<vmem>>, vector<2x32xf32>
    %cst_10 = arith.constant dense<0.000000e+00> : vector<4x32xf32>
    %11 = tpu.matmul %9, %10, %cst_10 {dimension_numbers = #tpu.dot_dimension_numbers<[1], [0], [0], [1], [0, 0, 1, 1], [], []>} : vector<4x2xf32>, vector<2x32xf32>, vector<4x32xf32> -> vector<4x32xf32>
    %12 = vector.extract_strided_slice %11 {offsets = [0, 0], sizes = [2, 32], strides = [1, 1]} : vector<4x32xf32> to vector<2x32xf32>
    %13 = vector.extract_strided_slice %11 {offsets = [2, 0], sizes = [2, 32], strides = [1, 1]} : vector<4x32xf32> to vector<2x32xf32>
    %14 = arith.addf %12, %13 : vector<2x32xf32>
    %15 = arith.negf %14 : vector<2x32xf32>
    %16 = math.exp %15 : vector<2x32xf32>
    %cst_11 = arith.constant 1.000000e+00 : f32
    %17 = vector.broadcast %cst_11 : f32 to vector<2x32xf32>
    %18 = arith.addf %17, %16 : vector<2x32xf32>
    %19 = arith.divf %17, %18 : vector<2x32xf32>
    %20 = vector.shape_cast %19 : vector<2x32xf32> to vector<2x32x1xf32>
    %21 = vector.broadcast %20 : vector<2x32x1xf32> to vector<2x32x256xf32>
    %22 = arith.mulf %0, %21 : vector<2x32x256xf32>
    %cst_12 = arith.constant dense<0.000000e+00> : vector<2x256xf32>
    %23 = vector.multi_reduction <add>, %22, %cst_12 [1] : vector<2x32x256xf32> to vector<2x256xf32>
    %cst_13 = arith.constant 3.200000e+01 : f32
    %24 = vector.broadcast %cst_13 : f32 to vector<2x256xf32>
    %25 = arith.divf %23, %24 : vector<2x256xf32>
    %cst_14 = arith.constant dense<0xFF800000> : vector<2x256xf32>
    %26 = vector.multi_reduction <maximumf>, %22, %cst_14 [1] : vector<2x32x256xf32> to vector<2x256xf32>
    %c0_15 = arith.constant 0 : index
    %c0_16 = arith.constant 0 : index
    %27 = vector.load %arg4[%c0_15, %c0_16] : memref<256x256xf32, #tpu.memory_space<vmem>>, vector<256x256xf32>
    %cst_17 = arith.constant dense<0.000000e+00> : vector<2x256xf32>
    %28 = tpu.matmul %25, %27, %cst_17 {dimension_numbers = #tpu.dot_dimension_numbers<[1], [0], [0], [1], [0, 0, 1, 1], [], []>} : vector<2x256xf32>, vector<256x256xf32>, vector<2x256xf32> -> vector<2x256xf32>
    %c0_18 = arith.constant 0 : index
    %c0_19 = arith.constant 0 : index
    %29 = vector.load %arg5[%c0_18, %c0_19] : memref<256x256xf32, #tpu.memory_space<vmem>>, vector<256x256xf32>
    %cst_20 = arith.constant dense<0.000000e+00> : vector<2x256xf32>
    %30 = tpu.matmul %26, %29, %cst_20 {dimension_numbers = #tpu.dot_dimension_numbers<[1], [0], [0], [1], [0, 0, 1, 1], [], []>} : vector<2x256xf32>, vector<256x256xf32>, vector<2x256xf32> -> vector<2x256xf32>
    %31 = arith.addf %28, %30 : vector<2x256xf32>
    %32 = arith.negf %31 : vector<2x256xf32>
    %33 = math.exp %32 : vector<2x256xf32>
    %cst_21 = arith.constant 1.000000e+00 : f32
    %34 = vector.broadcast %cst_21 : f32 to vector<2x256xf32>
    %35 = arith.addf %34, %33 : vector<2x256xf32>
    %36 = arith.divf %34, %35 : vector<2x256xf32>
    %37 = vector.shape_cast %36 : vector<2x256xf32> to vector<2x1x256xf32>
    %38 = vector.broadcast %37 : vector<2x1x256xf32> to vector<2x32x256xf32>
    %39 = arith.mulf %22, %38 : vector<2x32x256xf32>
    %c0_22 = arith.constant 0 : index
    %c0_23 = arith.constant 0 : index
    %c0_24 = arith.constant 0 : index
    %40 = vector.load %arg6[%c0_22, %c0_23, %c0_24] : memref<2x32x256xf32, #tpu.memory_space<vmem>>, vector<2x32x256xf32>
    tpu.vector_store %arg6[%c0_22, %c0_23, %c0_24], %39 {strides = array<i32>} : memref<2x32x256xf32, #tpu.memory_space<vmem>>, vector<2x32x256xf32>,
    return
  }
  func.func @transform_0(%arg0: i32) -> (i32, i32, i32) {
    %c0_i32 = arith.constant 0 : i32
    %c0_i32_0 = arith.constant 0 : i32
    %c0_i32_1 = arith.constant 0 : i32
    return %arg0, %c0_i32, %c0_i32_0 : i32, i32, i32
  }
  func.func @transform_1(%arg0: i32) -> (i32, i32) {
    %c0_i32 = arith.constant 0 : i32
    %c0_i32_0 = arith.constant 0 : i32
    %c0_i32_1 = arith.constant 0 : i32
    return %c0_i32, %c0_i32_0 : i32, i32
  }
  func.func @transform_2(%arg0: i32) -> (i32, i32) {
    %c0_i32 = arith.constant 0 : i32
    %c0_i32_0 = arith.constant 0 : i32
    %c0_i32_1 = arith.constant 0 : i32
    return %c0_i32, %c0_i32_0 : i32, i32
  }
  func.func @transform_3(%arg0: i32) -> (i32, i32) {
    %c0_i32 = arith.constant 0 : i32
    %c0_i32_0 = arith.constant 0 : i32
    %c0_i32_1 = arith.constant 0 : i32
    return %c0_i32, %c0_i32_0 : i32, i32
  }
  func.func @transform_4(%arg0: i32) -> (i32, i32) {
    %c0_i32 = arith.constant 0 : i32
    %c0_i32_0 = arith.constant 0 : i32
    %c0_i32_1 = arith.constant 0 : i32
    return %c0_i32, %c0_i32_0 : i32, i32
  }
  func.func @transform_5(%arg0: i32) -> (i32, i32, i32) {
    %c0_i32 = arith.constant 0 : i32
    %c0_i32_0 = arith.constant 0 : i32
    %c0_i32_1 = arith.constant 0 : i32
    return %arg0, %c0_i32, %c0_i32_0 : i32, i32, i32
  }
}

</mosaic_0001>

<llo_original>
// kernel: tpu_custom_call.1
$region0: #{tpu_custom_call.1}
  #allocation0 [shape = 'u32[]', space=smem, size = 0x4, offset = 0x4, fixed_abs, tag = 'smem constant byte address 0x4 - core index']
  #allocation1 [shape = 'u32[72,128]{1,0:T(1,128)}', space=vmem, size = 0x9000, scoped, tag = 'internal scratch']
  %s0 = inlined_call_operand.hbm [shape: f32[2,32,256], index: 0, kind: input, shape index: {}]
  %s1 = inlined_call_operand.vmem [shape: f32[32,2], index: 1, kind: input, shape index: {}]
  %s2 = inlined_call_operand.vmem [shape: f32[2,32], index: 2, kind: input, shape index: {}]
  %s3 = inlined_call_operand.hbm [shape: f32[256,256], index: 3, kind: input, shape index: {}]
  %s4 = inlined_call_operand.hbm [shape: f32[256,256], index: 4, kind: input, shape index: {}]
  %s5 = inlined_call_operand.hbm [shape: f32[2,32,256], index: 5, kind: output, shape index: {}]
  %s6 = sld [smem:[#allocation0]]
  $region42: #{tpu_custom_call.1} parent=0
    _
  %s8 = ssub.s32 1, %s6
  %s9 = scalar_select 0, %s8, %s6
  $region1: #{tpu_custom_call.1} parent=0
    #allocation2 [shape = 'u8[65536]{0}', space=vmem, size = 0x10000, scoped, tag = 'input window, operand 0, single buffered']
    #allocation3 [shape = 's32[1]{0}', space=sflag, size = 0x4, scoped, tag = 'scoped memory for tpu_custom_call.1']
    #allocation4 [shape = 's32[1]{0}', space=sflag, size = 0x4, scoped, tag = 'scoped memory for tpu_custom_call.1']
    #allocation5 [shape = 'u8[262144]{0}', space=vmem, size = 0x40000, scoped, tag = 'input window, operand 3, single buffered']
    #allocation6 [shape = 's32[1]{0}', space=sflag, size = 0x4, scoped, tag = 'scoped memory for tpu_custom_call.1']
    #allocation7 [shape = 'u8[262144]{0}', space=vmem, size = 0x40000, scoped, tag = 'input window, operand 4, single buffered']
    #allocation8 [shape = 'u8[65536]{0}', space=vmem, size = 0x10000, scoped, tag = 'output window, operand 0, single buffered']
    %10 = vsyncpa [#allocation3], 0
    %11 = vsyncpa [#allocation6], 0
    %12 = vsyncpa [#allocation4], 0
    // Predicated region
    $region2: #{tpu_custom_call.1} parent=1 // pred_check
      _
    $region3: #{tpu_custom_call.1} parent=1 // pred_check_branch
      %14 = sbr.rel (0) target = $region5
    $region4: #{tpu_custom_call.1} parent=1 // pred_region
      %16 = vsyncadd [#allocation3], 0
      %s17 = sshll.u32 %s0, 4
      %s18 = int_to_ptr.hbm [resolvable:$true] %s17
      %s19 = sshll.u32 [#allocation2], 4
      %s20 = int_to_ptr.vmem [resolvable:$true] %s19
      %25 = dma.hbm_to_vmem [thread:$0]  %s18, 2048, %s20, [#allocation3], 256, 256, 16
    $region5: #{tpu_custom_call.1} parent=1 // pred_fallthru
      _
    // Predicated region
    $region6: #{tpu_custom_call.1} parent=1 // pred_check
      _
    $region7: #{tpu_custom_call.1} parent=1 // pred_check_branch
      %27 = sbr.rel (0) target = $region9
    $region8: #{tpu_custom_call.1} parent=1 // pred_region
      _
    $region9: #{tpu_custom_call.1} parent=1 // pred_fallthru
      _
    // Predicated region
    $region10: #{tpu_custom_call.1} parent=1 // pred_check
      _
    $region11: #{tpu_custom_call.1} parent=1 // pred_check_branch
      %29 = sbr.rel (0) target = $region13
    $region12: #{tpu_custom_call.1} parent=1 // pred_region
      _
    $region13: #{tpu_custom_call.1} parent=1 // pred_fallthru
      _
    // Predicated region
    $region14: #{tpu_custom_call.1} parent=1 // pred_check
      _
    $region15: #{tpu_custom_call.1} parent=1 // pred_check_branch
      %31 = sbr.rel (0) target = $region17
    $region16: #{tpu_custom_call.1} parent=1 // pred_region
      %33 = vsyncadd [#allocation6], 0
      %s34 = sshll.u32 %s3, 4
      %s35 = int_to_ptr.hbm [resolvable:$true] %s34
      %s36 = sshll.u32 [#allocation5], 4
      %s37 = int_to_ptr.vmem [resolvable:$true] %s36
      %42 = dma.hbm_to_vmem [thread:$0]  %s35, 8192, %s37, [#allocation6], 256, 256, 16
    $region17: #{tpu_custom_call.1} parent=1 // pred_fallthru
      _
    // Predicated region
    $region18: #{tpu_custom_call.1} parent=1 // pred_check
      _
    $region19: #{tpu_custom_call.1} parent=1 // pred_check_branch
      %44 = sbr.rel (0) target = $region21
    $region20: #{tpu_custom_call.1} parent=1 // pred_region
      %46 = vsyncadd [#allocation6], 0
      %s47 = sshll.u32 %s4, 4
      %s48 = int_to_ptr.hbm [resolvable:$true] %s47
      %s49 = sshll.u32 [#allocation7], 4
      %s50 = int_to_ptr.vmem [resolvable:$true] %s49
      %55 = dma.hbm_to_vmem [thread:$0]  %s48, 8192, %s50, [#allocation6], 256, 256, 16
    $region21: #{tpu_custom_call.1} parent=1 // pred_fallthru
      _
    // Predicated region
    $region22: #{tpu_custom_call.1} parent=1 // pred_check
      _
    $region23: #{tpu_custom_call.1} parent=1 // pred_check_branch
      %57 = sbr.rel (0) target = $region25
    $region24: #{tpu_custom_call.1} parent=1 // pred_region
      %59 = dma.done [#allocation3], 2048
    $region25: #{tpu_custom_call.1} parent=1 // pred_fallthru
      _
    // Predicated region
    $region26: #{tpu_custom_call.1} parent=1 // pred_check
      _
    $region27: #{tpu_custom_call.1} parent=1 // pred_check_branch
      %61 = sbr.rel (0) target = $region29
    $region28: #{tpu_custom_call.1} parent=1 // pred_region
      %63 = dma.done [#allocation6], 8192
    $region29: #{tpu_custom_call.1} parent=1 // pred_fallthru
      _
    // Predicated region
    $region30: #{tpu_custom_call.1} parent=1 // pred_check
      _
    $region31: #{tpu_custom_call.1} parent=1 // pred_check_branch
      %65 = sbr.rel (0) target = $region33
    $region32: #{tpu_custom_call.1} parent=1 // pred_region
      %67 = dma.done [#allocation6], 8192
    $region33: #{tpu_custom_call.1} parent=1 // pred_fallthru
      _
    %v68 = vld [vmem:[#allocation2] sm:$0xff]
    %v69 = vld [vmem:[#allocation2 + $0x8] sm:$0xff]
    %v70 = vld [vmem:[#allocation2 + $0x10] sm:$0xff]
    %v71 = vld [vmem:[#allocation2 + $0x18] sm:$0xff]
    %v72 = vld [vmem:[#allocation2 + $0x20] sm:$0xff]
    %v73 = vld [vmem:[#allocation2 + $0x28] sm:$0xff]
    %v74 = vld [vmem:[#allocation2 + $0x30] sm:$0xff]
    %v75 = vld [vmem:[#allocation2 + $0x38] sm:$0xff]
    %v76 = vld [vmem:[#allocation2 + $0x40] sm:$0xff]
    %v77 = vld [vmem:[#allocation2 + $0x48] sm:$0xff]
    %v78 = vld [vmem:[#allocation2 + $0x50] sm:$0xff]
    %v79 = vld [vmem:[#allocation2 + $0x58] sm:$0xff]
    %v80 = vld [vmem:[#allocation2 + $0x60] sm:$0xff]
    %v81 = vld [vmem:[#allocation2 + $0x68] sm:$0xff]
    %v82 = vld [vmem:[#allocation2 + $0x70] sm:$0xff]
    %v83 = vld [vmem:[#allocation2 + $0x78] sm:$0xff]
    %v84 = vadd.f32 %v68, %v69
    %85 = vadd.xlane.f32.xlu0 %v84
    %v86 = vpop.xlane.xlu0 %85
    %v87 = vadd.f32 %v70, %v71
    %88 = vadd.xlane.f32.xlu0 %v87
    %v89 = vpop.xlane.xlu0 %88
    %v90 = vadd.f32 %v72, %v73
    %91 = vadd.xlane.f32.xlu0 %v90
    %v92 = vpop.xlane.xlu0 %91
    %v93 = vadd.f32 %v74, %v75
    %94 = vadd.xlane.f32.xlu0 %v93
    %v95 = vpop.xlane.xlu0 %94
    %v96 = vadd.f32 %v76, %v77
    %97 = vadd.xlane.f32.xlu0 %v96
    %v98 = vpop.xlane.xlu0 %97
    %v99 = vadd.f32 %v78, %v79
    %100 = vadd.xlane.f32.xlu0 %v99
    %v101 = vpop.xlane.xlu0 %100
    %v102 = vadd.f32 %v80, %v81
    %103 = vadd.xlane.f32.xlu0 %v102
    %v104 = vpop.xlane.xlu0 %103
    %v105 = vadd.f32 %v82, %v83
    %106 = vadd.xlane.f32.xlu0 %v105
    %v107 = vpop.xlane.xlu0 %106
    %v108 = vrcp.pop 256.0
    %v109 = vmul.f32 256.0, %v108
    %v110 = vsub.f32 1.0, %v109
    %v111 = vmul.f32 %v108, %v110
    %v112 = vadd.f32 %v108, %v111
    %vm113 = vweird.f32 %v108
    %v114 = vsel %vm113, %v108, %v112
    %v115 = vmul.f32 %v86, %v114
    %v116 = vmul.f32 %v89, %v114
    %v117 = vmul.f32 %v92, %v114
    %v118 = vmul.f32 %v95, %v114
    %v119 = vmul.f32 %v98, %v114
    %v120 = vmul.f32 %v101, %v114
    %v121 = vmul.f32 %v104, %v114
    %v122 = vmul.f32 %v107, %v114
    %v123 = vmax.f32 %v68, %v69
    %124 = vmax.xlane.f32.xlu0 %v123
    %v125 = vpop.xlane.xlu0 %124
    %v126 = vmax.f32 %v70, %v71
    %127 = vmax.xlane.f32.xlu0 %v126
    %v128 = vpop.xlane.xlu0 %127
    %v129 = vmax.f32 %v72, %v73
    %130 = vmax.xlane.f32.xlu0 %v129
    %v131 = vpop.xlane.xlu0 %130
    %v132 = vmax.f32 %v74, %v75
    %133 = vmax.xlane.f32.xlu0 %v132
    %v134 = vpop.xlane.xlu0 %133
    %v135 = vmax.f32 %v76, %v77
    %136 = vmax.xlane.f32.xlu0 %v135
    %v137 = vpop.xlane.xlu0 %136
    %v138 = vmax.f32 %v78, %v79
    %139 = vmax.xlane.f32.xlu0 %v138
    %v140 = vpop.xlane.xlu0 %139
    %v141 = vmax.f32 %v80, %v81
    %142 = vmax.xlane.f32.xlu0 %v141
    %v143 = vpop.xlane.xlu0 %142
    %v144 = vmax.f32 %v82, %v83
    %145 = vmax.xlane.f32.xlu0 %v144
    %v146 = vpop.xlane.xlu0 %145
    %v155 = vlaneseq
    %v156 = vand.u32 %v155, 127
    %v157 = vperm.slane %v115, %v156
    %v158 = vadd.s32 %v156, 4294967288
    %v159 = vperm.slane %v116, %v158
    %vm160 = vcmask 130112
    %v161 = vsel %vm160, %v159, %v157
    %v162 = vadd.s32 %v156, 4294967280
    %v163 = vperm.slane %v117, %v162
    %vm164 = vcmask 195712
    %v165 = vsel %vm164, %v163, %v161
    %v166 = vadd.s32 %v156, 4294967272
    %v167 = vperm.slane %v118, %v166
    %vm168 = vcmask 261312
    %v169 = vsel %vm168, %v167, %v165
    %v170 = vperm.slane %v119, %v156
    %v171 = vperm.slane %v120, %v158
    %v172 = vsel %vm160, %v171, %v170
    %v173 = vperm.slane %v121, %v162
    %v174 = vsel %vm164, %v173, %v172
    %v175 = vperm.slane %v122, %v166
    %v176 = vsel %vm168, %v175, %v174
    %vm177 = vcmask 1041409
    %v178 = vsel %vm177, %v176, %v169
    %v188 = vperm.slane %v125, %v156
    %v189 = vperm.slane %v128, %v158
    %v190 = vsel %vm160, %v189, %v188
    %v191 = vperm.slane %v131, %v162
    %v192 = vsel %vm164, %v191, %v190
    %v193 = vperm.slane %v134, %v166
    %v194 = vsel %vm168, %v193, %v192
    %v195 = vperm.slane %v137, %v156
    %v196 = vperm.slane %v140, %v158
    %v197 = vsel %vm160, %v196, %v195
    %v198 = vperm.slane %v143, %v162
    %v199 = vsel %vm164, %v198, %v197
    %v200 = vperm.slane %v146, %v166
    %v201 = vsel %vm168, %v200, %v199
    %vm202 = vcmask 1043459
    %v203 = vsel %vm202, %v201, %v194
    %vm205 = vcmask 1041408
    %v206 = vsel %vm205, %v178, %v203
    %v207 = vld [vmem:[%s1] sm:$0xff]
    %v208 = vld [vmem:[%s1 + $0x8] sm:$0xff]
    %v209 = vld [vmem:[%s1 + $0x10] sm:$0xff]
    %v210 = vld [vmem:[%s1 + $0x18] sm:$0xff]
    %vm211 = vcmask 261120
    %v213 = vsel %vm211, %v206, 0
    %215 = vmatpush.msra.mxu0 0.0
    %216 = vmatpush.msra.mxu0 0.0
    %217 = vmatpush.msra.mxu0 0.0
    %218 = vmatpush.msra.mxu0 0.0
    %219 = vmatpush.msra.mxu0 0.0
    %220 = vmatpush.msra.mxu0 0.0
    %221 = vmatpush.msra.mxu0 0.0
    %222 = vmatpush.msra.mxu0 0.0
    %223 = vmatpush.msra.mxu0 0.0
    %224 = vmatpush.msra.mxu0 0.0
    %225 = vmatpush.msra.mxu0 0.0
    %226 = vmatpush.msra.mxu0 0.0
    %227 = vmatpush.msra.mxu0 %v210
    %228 = vmatpush.msra.mxu0 %v209
    %229 = vmatpush.msra.mxu0 %v208
    %230 = vmatpush.msra.mxu0 %v207
    %231 = vmatmul.f32.gmra.mxu0 %v213
    %v232 = vpop.f32.mrf.mxu0
    %v233 = vadd.f32 0.0, %v232
    %234 = vdwg.mxu0
    %v235 = vmax.f32 %v233, 0.0
    %v236 = vld [vmem:[%s2] sm:$0x3]
    %vm237 = vcmask 15360
    %v239 = vsel %vm237, %v235, 0
    %v242 = vsel %vm205, %v236, 0
    %244 = vmatpush.msra.mxu0 0.0
    %245 = vmatpush.msra.mxu0 0.0
    %246 = vmatpush.msra.mxu0 0.0
    %247 = vmatpush.msra.mxu0 0.0
    %248 = vmatpush.msra.mxu0 0.0
    %249 = vmatpush.msra.mxu0 0.0
    %250 = vmatpush.msra.mxu0 0.0
    %251 = vmatpush.msra.mxu0 0.0
    %252 = vmatpush.msra.mxu0 0.0
    %253 = vmatpush.msra.mxu0 0.0
    %254 = vmatpush.msra.mxu0 0.0
    %255 = vmatpush.msra.mxu0 0.0
    %256 = vmatpush.msra.mxu0 0.0
    %257 = vmatpush.msra.mxu0 0.0
    %258 = vmatpush.msra.mxu0 0.0
    %259 = vmatpush.msra.mxu0 %v242
    %260 = vmatmul.f32.gmra.mxu0 %v239
    %v261 = vpop.f32.mrf.mxu0
    %v262 = vadd.f32 0.0, %v261
    %263 = vdwg.mxu0
    %v265 = vrot.slane %v262, 2
    %v267 = vadd.f32 %v262, %v265
    %v268 = vxor.u32 %v267, 2147483648
    %v269 = vmul.f32 %v268, 1.442695
    %v270 = vpow.pop %v269
    %v271 = vadd.f32 %v270, 1.0
    %v272 = vrcp.pop %v271
    %v273 = vmul.f32 %v271, %v272
    %v274 = vsub.f32 1.0, %v273
    %v275 = vmul.f32 %v272, %v274
    %v276 = vadd.f32 %v272, %v275
    %vm277 = vweird.f32 %v271
    %vm278 = vweird.f32 %v272
    %vm279 = vmor %vm277, %vm278
    %v280 = vsel %vm279, %v272, %v276
    %v281 = vand.u32 2147483647, %v271
    %vm282 = vcmp.eq.f32.partialorder %v281, 8.507059e+37
    %v283 = vand.u32 %v271, 2147483648
    %v284 = vor.u32 1.1754944e-38, %v283
    %v285 = vsel %vm282, %v284, %v280
    %v286 = vmul.f32 1.0, %v285
    %v287 = vperm.slane %v286, 0
    %v288 = vlaneseq
    %v289 = vshrl.u32 %v288, 7
    %291 = vset.pattern.permute.xlu0 %v289
    %292 = vperm.xlu0 %291, %v287
    %v293 = vpop.permute.xlu0 %292
    %v294 = vlaneseq
    %v295 = vshrl.u32 %v294, 7
    %v296 = vadd.s32 %v295, 8
    %297 = vset.pattern.permute.xlu0 %v296
    %298 = vperm.xlu0 %297, %v287
    %v299 = vpop.permute.xlu0 %298
    %v300 = vlaneseq
    %v301 = vshrl.u32 %v300, 7
    %v302 = vadd.s32 %v301, 16
    %303 = vset.pattern.permute.xlu0 %v302
    %304 = vperm.xlu0 %303, %v287
    %v305 = vpop.permute.xlu0 %304
    %v306 = vlaneseq
    %v307 = vshrl.u32 %v306, 7
    %v308 = vadd.s32 %v307, 24
    %309 = vset.pattern.permute.xlu0 %v308
    %310 = vperm.xlu0 %309, %v287
    %v311 = vpop.permute.xlu0 %310
    %v312 = vperm.slane %v286, 1
    %v313 = vlaneseq
    %v314 = vshrl.u32 %v313, 7
    %316 = vset.pattern.permute.xlu0 %v314
    %317 = vperm.xlu0 %316, %v312
    %v318 = vpop.permute.xlu0 %317
    %v319 = vlaneseq
    %v320 = vshrl.u32 %v319, 7
    %v321 = vadd.s32 %v320, 8
    %322 = vset.pattern.permute.xlu0 %v321
    %323 = vperm.xlu0 %322, %v312
    %v324 = vpop.permute.xlu0 %323
    %v325 = vlaneseq
    %v326 = vshrl.u32 %v325, 7
    %v327 = vadd.s32 %v326, 16
    %328 = vset.pattern.permute.xlu0 %v327
    %329 = vperm.xlu0 %328, %v312
    %v330 = vpop.permute.xlu0 %329
    %v331 = vlaneseq
    %v332 = vshrl.u32 %v331, 7
    %v333 = vadd.s32 %v332, 24
    %334 = vset.pattern.permute.xlu0 %v333
    %335 = vperm.xlu0 %334, %v312
    %v336 = vpop.permute.xlu0 %335
    %v337 = vmul.f32 %v68, %v293
    %v338 = vmul.f32 %v69, %v293
    %v339 = vmul.f32 %v70, %v299
    %v340 = vmul.f32 %v71, %v299
    %v341 = vmul.f32 %v72, %v305
    %v342 = vmul.f32 %v73, %v305
    %v343 = vmul.f32 %v74, %v311
    %v344 = vmul.f32 %v75, %v311
    %v345 = vmul.f32 %v76, %v318
    %v346 = vmul.f32 %v77, %v318
    %v347 = vmul.f32 %v78, %v324
    %v348 = vmul.f32 %v79, %v324
    %v349 = vmul.f32 %v80, %v330
    %v350 = vmul.f32 %v81, %v330
    %v351 = vmul.f32 %v82, %v336
    %v352 = vmul.f32 %v83, %v336
    %v353 = vadd.f32 %v337, %v339
    %v354 = vadd.f32 %v353, %v341
    %v355 = vadd.f32 %v354, %v343
    %v356 = vrot.slane %v355, 4
    %v357 = vadd.f32 %v355, %v356
    %v358 = vrot.slane %v357, 2
    %v359 = vadd.f32 %v357, %v358
    %v360 = vrot.slane %v359, 1
    %v361 = vadd.f32 %v359, %v360
    %v362 = vadd.f32 %v338, %v340
    %v363 = vadd.f32 %v362, %v342
    %v364 = vadd.f32 %v363, %v344
    %v365 = vrot.slane %v364, 4
    %v366 = vadd.f32 %v364, %v365
    %v367 = vrot.slane %v366, 2
    %v368 = vadd.f32 %v366, %v367
    %v369 = vrot.slane %v368, 1
    %v370 = vadd.f32 %v368, %v369
    %v371 = vadd.f32 %v345, %v347
    %v372 = vadd.f32 %v371, %v349
    %v373 = vadd.f32 %v372, %v351
    %v374 = vrot.slane %v373, 4
    %v375 = vadd.f32 %v373, %v374
    %v376 = vrot.slane %v375, 2
    %v377 = vadd.f32 %v375, %v376
    %v378 = vrot.slane %v377, 1
    %v379 = vadd.f32 %v377, %v378
    %v380 = vadd.f32 %v346, %v348
    %v381 = vadd.f32 %v380, %v350
    %v382 = vadd.f32 %v381, %v352
    %v383 = vrot.slane %v382, 4
    %v384 = vadd.f32 %v382, %v383
    %v385 = vrot.slane %v384, 2
    %v386 = vadd.f32 %v384, %v385
    %v387 = vrot.slane %v386, 1
    %v388 = vadd.f32 %v386, %v387
    %v389 = vrcp.pop 32.0
    %v390 = vmul.f32 32.0, %v389
    %v391 = vsub.f32 1.0, %v390
    %v392 = vmul.f32 %v389, %v391
    %v393 = vadd.f32 %v389, %v392
    %vm394 = vweird.f32 %v389
    %v395 = vsel %vm394, %v389, %v393
    %v396 = vmul.f32 %v361, %v395
    %v397 = vmul.f32 %v370, %v395
    %v398 = vmul.f32 %v379, %v395
    %v399 = vmul.f32 %v388, %v395
    %v400 = vmax.f32 %v337, %v339
    %v401 = vmax.f32 %v400, %v341
    %v402 = vmax.f32 %v401, %v343
    %v403 = vrot.slane %v402, 4
    %v404 = vmax.f32 %v402, %v403
    %v405 = vrot.slane %v404, 2
    %v406 = vmax.f32 %v404, %v405
    %v407 = vrot.slane %v406, 1
    %v408 = vmax.f32 %v406, %v407
    %v409 = vmax.f32 %v338, %v340
    %v410 = vmax.f32 %v409, %v342
    %v411 = vmax.f32 %v410, %v344
    %v412 = vrot.slane %v411, 4
    %v413 = vmax.f32 %v411, %v412
    %v414 = vrot.slane %v413, 2
    %v415 = vmax.f32 %v413, %v414
    %v416 = vrot.slane %v415, 1
    %v417 = vmax.f32 %v415, %v416
    %v418 = vmax.f32 %v345, %v347
    %v419 = vmax.f32 %v418, %v349
    %v420 = vmax.f32 %v419, %v351
    %v421 = vrot.slane %v420, 4
    %v422 = vmax.f32 %v420, %v421
    %v423 = vrot.slane %v422, 2
    %v424 = vmax.f32 %v422, %v423
    %v425 = vrot.slane %v424, 1
    %v426 = vmax.f32 %v424, %v425
    %v427 = vmax.f32 %v346, %v348
    %v428 = vmax.f32 %v427, %v350
    %v429 = vmax.f32 %v428, %v352
    %v430 = vrot.slane %v429, 4
    %v431 = vmax.f32 %v429, %v430
    %v432 = vrot.slane %v431, 2
    %v433 = vmax.f32 %v431, %v432
    %v434 = vrot.slane %v433, 1
    %v435 = vmax.f32 %v433, %v434
    %v436 = vld [vmem:[#allocation5] sm:$0xff]
    %v437 = vld [vmem:[#allocation5 + $0x8] sm:$0xff]
    %v438 = vld [vmem:[#allocation5 + $0x10] sm:$0xff]
    %v439 = vld [vmem:[#allocation5 + $0x18] sm:$0xff]
    %v440 = vld [vmem:[#allocation5 + $0x20] sm:$0xff]
    %v441 = vld [vmem:[#allocation5 + $0x28] sm:$0xff]
    %v442 = vld [vmem:[#allocation5 + $0x30] sm:$0xff]
    %v443 = vld [vmem:[#allocation5 + $0x38] sm:$0xff]
    %v444 = vld [vmem:[#allocation5 + $0x40] sm:$0xff]
    %v445 = vld [vmem:[#allocation5 + $0x48] sm:$0xff]
    %v446 = vld [vmem:[#allocation5 + $0x50] sm:$0xff]
    %v447 = vld [vmem:[#allocation5 + $0x58] sm:$0xff]
    %v448 = vld [vmem:[#allocation5 + $0x60] sm:$0xff]
    %v449 = vld [vmem:[#allocation5 + $0x68] sm:$0xff]
    %v450 = vld [vmem:[#allocation5 + $0x70] sm:$0xff]
    %v451 = vld [vmem:[#allocation5 + $0x78] sm:$0xff]
    %v452 = vld [vmem:[#allocation5 + $0x80] sm:$0xff]
    %v453 = vld [vmem:[#allocation5 + $0x88] sm:$0xff]
    %v454 = vld [vmem:[#allocation5 + $0x90] sm:$0xff]
    %v455 = vld [vmem:[#allocation5 + $0x98] sm:$0xff]
    %v456 = vld [vmem:[#allocation5 + $0xa0] sm:$0xff]
    %v457 = vld [vmem:[#allocation5 + $0xa8] sm:$0xff]
    %v458 = vld [vmem:[#allocation5 + $0xb0] sm:$0xff]
    %v459 = vld [vmem:[#allocation5 + $0xb8] sm:$0xff]
    %v460 = vld [vmem:[#allocation5 + $0xc0] sm:$0xff]
    %v461 = vld [vmem:[#allocation5 + $0xc8] sm:$0xff]
    %v462 = vld [vmem:[#allocation5 + $0xd0] sm:$0xff]
    %v463 = vld [vmem:[#allocation5 + $0xd8] sm:$0xff]
    %v464 = vld [vmem:[#allocation5 + $0xe0] sm:$0xff]
    %v465 = vld [vmem:[#allocation5 + $0xe8] sm:$0xff]
    %v466 = vld [vmem:[#allocation5 + $0xf0] sm:$0xff]
    %v467 = vld [vmem:[#allocation5 + $0xf8] sm:$0xff]
    %v468 = vld [vmem:[#allocation5 + $0x100] sm:$0xff]
    %v469 = vld [vmem:[#allocation5 + $0x108] sm:$0xff]
    %v470 = vld [vmem:[#allocation5 + $0x110] sm:$0xff]
    %v471 = vld [vmem:[#allocation5 + $0x118] sm:$0xff]
    %v472 = vld [vmem:[#allocation5 + $0x120] sm:$0xff]
    %v473 = vld [vmem:[#allocation5 + $0x128] sm:$0xff]
    %v474 = vld [vmem:[#allocation5 + $0x130] sm:$0xff]
    %v475 = vld [vmem:[#allocation5 + $0x138] sm:$0xff]
    %v476 = vld [vmem:[#allocation5 + $0x140] sm:$0xff]
    %v477 = vld [vmem:[#allocation5 + $0x148] sm:$0xff]
    %v478 = vld [vmem:[#allocation5 + $0x150] sm:$0xff]
    %v479 = vld [vmem:[#allocation5 + $0x158] sm:$0xff]
    %v480 = vld [vmem:[#allocation5 + $0x160] sm:$0xff]
    %v481 = vld [vmem:[#allocation5 + $0x168] sm:$0xff]
    %v482 = vld [vmem:[#allocation5 + $0x170] sm:$0xff]
    %v483 = vld [vmem:[#allocation5 + $0x178] sm:$0xff]
    %v484 = vld [vmem:[#allocation5 + $0x180] sm:$0xff]
    %v485 = vld [vmem:[#allocation5 + $0x188] sm:$0xff]
    %v486 = vld [vmem:[#allocation5 + $0x190] sm:$0xff]
    %v487 = vld [vmem:[#allocation5 + $0x198] sm:$0xff]
    %v488 = vld [vmem:[#allocation5 + $0x1a0] sm:$0xff]
    %v489 = vld [vmem:[#allocation5 + $0x1a8] sm:$0xff]
    %v490 = vld [vmem:[#allocation5 + $0x1b0] sm:$0xff]
    %v491 = vld [vmem:[#allocation5 + $0x1b8] sm:$0xff]
    %v492 = vld [vmem:[#allocation5 + $0x1c0] sm:$0xff]
    %v493 = vld [vmem:[#allocation5 + $0x1c8] sm:$0xff]
    %v494 = vld [vmem:[#allocation5 + $0x1d0] sm:$0xff]
    %v495 = vld [vmem:[#allocation5 + $0x1d8] sm:$0xff]
    %v496 = vld [vmem:[#allocation5 + $0x1e0] sm:$0xff]
    %v497 = vld [vmem:[#allocation5 + $0x1e8] sm:$0xff]
    %v498 = vld [vmem:[#allocation5 + $0x1f0] sm:$0xff]
    %v499 = vld [vmem:[#allocation5 + $0x1f8] sm:$0xff]
    %v500 = vld [vmem:[#allocation7] sm:$0xff]
    %v501 = vld [vmem:[#allocation7 + $0x8] sm:$0xff]
    %v502 = vld [vmem:[#allocation7 + $0x10] sm:$0xff]
    %v503 = vld [vmem:[#allocation7 + $0x18] sm:$0xff]
    %v504 = vld [vmem:[#allocation7 + $0x20] sm:$0xff]
    %v505 = vld [vmem:[#allocation7 + $0x28] sm:$0xff]
    %v506 = vld [vmem:[#allocation7 + $0x30] sm:$0xff]
    %v507 = vld [vmem:[#allocation7 + $0x38] sm:$0xff]
    %v508 = vld [vmem:[#allocation7 + $0x40] sm:$0xff]
    %v509 = vld [vmem:[#allocation7 + $0x48] sm:$0xff]
    %v510 = vld [vmem:[#allocation7 + $0x50] sm:$0xff]
    %v511 = vld [vmem:[#allocation7 + $0x58] sm:$0xff]
    %v512 = vld [vmem:[#allocation7 + $0x60] sm:$0xff]
    %v513 = vld [vmem:[#allocation7 + $0x68] sm:$0xff]
    %v514 = vld [vmem:[#allocation7 + $0x70] sm:$0xff]
    %v515 = vld [vmem:[#allocation7 + $0x78] sm:$0xff]
    %v516 = vld [vmem:[#allocation7 + $0x80] sm:$0xff]
    %v517 = vld [vmem:[#allocation7 + $0x88] sm:$0xff]
    %v518 = vld [vmem:[#allocation7 + $0x90] sm:$0xff]
    %v519 = vld [vmem:[#allocation7 + $0x98] sm:$0xff]
    %v520 = vld [vmem:[#allocation7 + $0xa0] sm:$0xff]
    %v521 = vld [vmem:[#allocation7 + $0xa8] sm:$0xff]
    %v522 = vld [vmem:[#allocation7 + $0xb0] sm:$0xff]
    %v523 = vld [vmem:[#allocation7 + $0xb8] sm:$0xff]
    %v524 = vld [vmem:[#allocation7 + $0xc0] sm:$0xff]
    %v525 = vld [vmem:[#allocation7 + $0xc8] sm:$0xff]
    %v526 = vld [vmem:[#allocation7 + $0xd0] sm:$0xff]
    %v527 = vld [vmem:[#allocation7 + $0xd8] sm:$0xff]
    %v528 = vld [vmem:[#allocation7 + $0xe0] sm:$0xff]
    %v529 = vld [vmem:[#allocation7 + $0xe8] sm:$0xff]
    %v530 = vld [vmem:[#allocation7 + $0xf0] sm:$0xff]
    %v531 = vld [vmem:[#allocation7 + $0xf8] sm:$0xff]
    %v532 = vld [vmem:[#allocation7 + $0x100] sm:$0xff]
    %v533 = vld [vmem:[#allocation7 + $0x108] sm:$0xff]
    %v534 = vld [vmem:[#allocation7 + $0x110] sm:$0xff]
    %v535 = vld [vmem:[#allocation7 + $0x118] sm:$0xff]
    %v536 = vld [vmem:[#allocation7 + $0x120] sm:$0xff]
    %v537 = vld [vmem:[#allocation7 + $0x128] sm:$0xff]
    %v538 = vld [vmem:[#allocation7 + $0x130] sm:$0xff]
    %v539 = vld [vmem:[#allocation7 + $0x138] sm:$0xff]
    %v540 = vld [vmem:[#allocation7 + $0x140] sm:$0xff]
    %v541 = vld [vmem:[#allocation7 + $0x148] sm:$0xff]
    %v542 = vld [vmem:[#allocation7 + $0x150] sm:$0xff]
    %v543 = vld [vmem:[#allocation7 + $0x158] sm:$0xff]
    %v544 = vld [vmem:[#allocation7 + $0x160] sm:$0xff]
    %v545 = vld [vmem:[#allocation7 + $0x168] sm:$0xff]
    %v546 = vld [vmem:[#allocation7 + $0x170] sm:$0xff]
    %v547 = vld [vmem:[#allocation7 + $0x178] sm:$0xff]
    %v548 = vld [vmem:[#allocation7 + $0x180] sm:$0xff]
    %v549 = vld [vmem:[#allocation7 + $0x188] sm:$0xff]
    %v550 = vld [vmem:[#allocation7 + $0x190] sm:$0xff]
    %v551 = vld [vmem:[#allocation7 + $0x198] sm:$0xff]
    %v552 = vld [vmem:[#allocation7 + $0x1a0] sm:$0xff]
    %v553 = vld [vmem:[#allocation7 + $0x1a8] sm:$0xff]
    %v554 = vld [vmem:[#allocation7 + $0x1b0] sm:$0xff]
    %v555 = vld [vmem:[#allocation7 + $0x1b8] sm:$0xff]
    %v556 = vld [vmem:[#allocation7 + $0x1c0] sm:$0xff]
    %v557 = vld [vmem:[#allocation7 + $0x1c8] sm:$0xff]
    %v558 = vld [vmem:[#allocation7 + $0x1d0] sm:$0xff]
    %v559 = vld [vmem:[#allocation7 + $0x1d8] sm:$0xff]
    %v560 = vld [vmem:[#allocation7 + $0x1e0] sm:$0xff]
    %v561 = vld [vmem:[#allocation7 + $0x1e8] sm:$0xff]
    %v562 = vld [vmem:[#allocation7 + $0x1f0] sm:$0xff]
    %v563 = vld [vmem:[#allocation7 + $0x1f8] sm:$0xff]
    %v568 = vsel %vm177, %v426, %v408
    %v569 = vsel %vm177, %v435, %v417
    %572 = vmatpush.msra.mxu0 %v530
    %573 = vmatpush.msra.mxu0 %v528
    %574 = vmatpush.msra.mxu0 %v526
    %575 = vmatpush.msra.mxu0 %v524
    %576 = vmatpush.msra.mxu0 %v522
    %577 = vmatpush.msra.mxu0 %v520
    %578 = vmatpush.msra.mxu0 %v518
    %579 = vmatpush.msra.mxu0 %v516
    %580 = vmatpush.msra.mxu0 %v514
    %581 = vmatpush.msra.mxu0 %v512
    %582 = vmatpush.msra.mxu0 %v510
    %583 = vmatpush.msra.mxu0 %v508
    %584 = vmatpush.msra.mxu0 %v506
    %585 = vmatpush.msra.mxu0 %v504
    %586 = vmatpush.msra.mxu0 %v502
    %587 = vmatpush.msra.mxu0 %v500
    %588 = vmatmul.f32.gmra.mxu0 %v568
    %v589 = vpop.f32.mrf.mxu0
    %v590 = vadd.f32 0.0, %v589
    %591 = vdwg.mxu0
    %592 = vmatpush.msra.mxu0 %v562
    %593 = vmatpush.msra.mxu0 %v560
    %594 = vmatpush.msra.mxu0 %v558
    %595 = vmatpush.msra.mxu0 %v556
    %596 = vmatpush.msra.mxu0 %v554
    %597 = vmatpush.msra.mxu0 %v552
    %598 = vmatpush.msra.mxu0 %v550
    %599 = vmatpush.msra.mxu0 %v548
    %600 = vmatpush.msra.mxu0 %v546
    %601 = vmatpush.msra.mxu0 %v544
    %602 = vmatpush.msra.mxu0 %v542
    %603 = vmatpush.msra.mxu0 %v540
    %604 = vmatpush.msra.mxu0 %v538
    %605 = vmatpush.msra.mxu0 %v536
    %606 = vmatpush.msra.mxu0 %v534
    %607 = vmatpush.msra.mxu0 %v532
    %608 = vmatmul.f32.gmra.mxu0 %v569
    %v609 = vpop.f32.mrf.mxu0
    %v610 = vadd.f32 %v590, %v609
    %611 = vdwg.mxu0
    %612 = vmatpush.msra.mxu0 %v531
    %613 = vmatpush.msra.mxu0 %v529
    %614 = vmatpush.msra.mxu0 %v527
    %615 = vmatpush.msra.mxu0 %v525
    %616 = vmatpush.msra.mxu0 %v523
    %617 = vmatpush.msra.mxu0 %v521
    %618 = vmatpush.msra.mxu0 %v519
    %619 = vmatpush.msra.mxu0 %v517
    %620 = vmatpush.msra.mxu0 %v515
    %621 = vmatpush.msra.mxu0 %v513
    %622 = vmatpush.msra.mxu0 %v511
    %623 = vmatpush.msra.mxu0 %v509
    %624 = vmatpush.msra.mxu0 %v507
    %625 = vmatpush.msra.mxu0 %v505
    %626 = vmatpush.msra.mxu0 %v503
    %627 = vmatpush.msra.mxu0 %v501
    %628 = vmatmul.f32.gmra.mxu0 %v568
    %v629 = vpop.f32.mrf.mxu0
    %v630 = vadd.f32 0.0, %v629
    %631 = vdwg.mxu0
    %632 = vmatpush.msra.mxu0 %v563
    %633 = vmatpush.msra.mxu0 %v561
    %634 = vmatpush.msra.mxu0 %v559
    %635 = vmatpush.msra.mxu0 %v557
    %636 = vmatpush.msra.mxu0 %v555
    %637 = vmatpush.msra.mxu0 %v553
    %638 = vmatpush.msra.mxu0 %v551
    %639 = vmatpush.msra.mxu0 %v549
    %640 = vmatpush.msra.mxu0 %v547
    %641 = vmatpush.msra.mxu0 %v545
    %642 = vmatpush.msra.mxu0 %v543
    %643 = vmatpush.msra.mxu0 %v541
    %644 = vmatpush.msra.mxu0 %v539
    %645 = vmatpush.msra.mxu0 %v537
    %646 = vmatpush.msra.mxu0 %v535
    %647 = vmatpush.msra.mxu0 %v533
    %648 = vmatmul.f32.gmra.mxu0 %v569
    %v649 = vpop.f32.mrf.mxu0
    %v650 = vadd.f32 %v630, %v649
    %651 = vdwg.mxu0
    %v656 = vsel %vm177, %v398, %v396
    %v657 = vsel %vm177, %v399, %v397
    %660 = vmatpush.msra.mxu0 %v466
    %661 = vmatpush.msra.mxu0 %v464
    %662 = vmatpush.msra.mxu0 %v462
    %663 = vmatpush.msra.mxu0 %v460
    %664 = vmatpush.msra.mxu0 %v458
    %665 = vmatpush.msra.mxu0 %v456
    %666 = vmatpush.msra.mxu0 %v454
    %667 = vmatpush.msra.mxu0 %v452
    %668 = vmatpush.msra.mxu0 %v450
    %669 = vmatpush.msra.mxu0 %v448
    %670 = vmatpush.msra.mxu0 %v446
    %671 = vmatpush.msra.mxu0 %v444
    %672 = vmatpush.msra.mxu0 %v442
    %673 = vmatpush.msra.mxu0 %v440
    %674 = vmatpush.msra.mxu0 %v438
    %675 = vmatpush.msra.mxu0 %v436
    %676 = vmatmul.f32.gmra.mxu0 %v656
    %v677 = vpop.f32.mrf.mxu0
    %v678 = vadd.f32 %v610, %v677
    %679 = vdwg.mxu0
    %680 = vmatpush.msra.mxu0 %v498
    %681 = vmatpush.msra.mxu0 %v496
    %682 = vmatpush.msra.mxu0 %v494
    %683 = vmatpush.msra.mxu0 %v492
    %684 = vmatpush.msra.mxu0 %v490
    %685 = vmatpush.msra.mxu0 %v488
    %686 = vmatpush.msra.mxu0 %v486
    %687 = vmatpush.msra.mxu0 %v484
    %688 = vmatpush.msra.mxu0 %v482
    %689 = vmatpush.msra.mxu0 %v480
    %690 = vmatpush.msra.mxu0 %v478
    %691 = vmatpush.msra.mxu0 %v476
    %692 = vmatpush.msra.mxu0 %v474
    %693 = vmatpush.msra.mxu0 %v472
    %694 = vmatpush.msra.mxu0 %v470
    %695 = vmatpush.msra.mxu0 %v468
    %696 = vmatmul.f32.gmra.mxu0 %v657
    %v697 = vpop.f32.mrf.mxu0
    %v698 = vadd.f32 %v678, %v697
    %699 = vdwg.mxu0
    %700 = vmatpush.msra.mxu0 %v467
    %701 = vmatpush.msra.mxu0 %v465
    %702 = vmatpush.msra.mxu0 %v463
    %703 = vmatpush.msra.mxu0 %v461
    %704 = vmatpush.msra.mxu0 %v459
    %705 = vmatpush.msra.mxu0 %v457
    %706 = vmatpush.msra.mxu0 %v455
    %707 = vmatpush.msra.mxu0 %v453
    %708 = vmatpush.msra.mxu0 %v451
    %709 = vmatpush.msra.mxu0 %v449
    %710 = vmatpush.msra.mxu0 %v447
    %711 = vmatpush.msra.mxu0 %v445
    %712 = vmatpush.msra.mxu0 %v443
    %713 = vmatpush.msra.mxu0 %v441
    %714 = vmatpush.msra.mxu0 %v439
    %715 = vmatpush.msra.mxu0 %v437
    %716 = vmatmul.f32.gmra.mxu0 %v656
    %v717 = vpop.f32.mrf.mxu0
    %v718 = vadd.f32 %v650, %v717
    %719 = vdwg.mxu0
    %720 = vmatpush.msra.mxu0 %v499
    %721 = vmatpush.msra.mxu0 %v497
    %722 = vmatpush.msra.mxu0 %v495
    %723 = vmatpush.msra.mxu0 %v493
    %724 = vmatpush.msra.mxu0 %v491
    %725 = vmatpush.msra.mxu0 %v489
    %726 = vmatpush.msra.mxu0 %v487
    %727 = vmatpush.msra.mxu0 %v485
    %728 = vmatpush.msra.mxu0 %v483
    %729 = vmatpush.msra.mxu0 %v481
    %730 = vmatpush.msra.mxu0 %v479
    %731 = vmatpush.msra.mxu0 %v477
    %732 = vmatpush.msra.mxu0 %v475
    %733 = vmatpush.msra.mxu0 %v473
    %734 = vmatpush.msra.mxu0 %v471
    %735 = vmatpush.msra.mxu0 %v469
    %736 = vmatmul.f32.gmra.mxu0 %v657
    %v737 = vpop.f32.mrf.mxu0
    %v738 = vadd.f32 %v718, %v737
    %739 = vdwg.mxu0
    %v740 = vxor.u32 %v698, 2147483648
    %v741 = vxor.u32 %v738, 2147483648
    %v742 = vmul.f32 %v740, 1.442695
    %v743 = vpow.pop %v742
    %v744 = vmul.f32 %v741, 1.442695
    %v745 = vpow.pop %v744
    %v746 = vadd.f32 %v743, 1.0
    %v747 = vadd.f32 %v745, 1.0
    %v748 = vrcp.pop %v746
    %v749 = vmul.f32 %v746, %v748
    %v750 = vsub.f32 1.0, %v749
    %v751 = vmul.f32 %v748, %v750
    %v752 = vadd.f32 %v748, %v751
    %vm753 = vweird.f32 %v746
    %vm754 = vweird.f32 %v748
    %vm755 = vmor %vm753, %vm754
    %v756 = vsel %vm755, %v748, %v752
    %v757 = vand.u32 2147483647, %v746
    %vm758 = vcmp.eq.f32.partialorder %v757, 8.507059e+37
    %v759 = vand.u32 %v746, 2147483648
    %v760 = vor.u32 1.1754944e-38, %v759
    %v761 = vsel %vm758, %v760, %v756
    %v762 = vmul.f32 1.0, %v761
    %v763 = vrcp.pop %v747
    %v764 = vmul.f32 %v747, %v763
    %v765 = vsub.f32 1.0, %v764
    %v766 = vmul.f32 %v763, %v765
    %v767 = vadd.f32 %v763, %v766
    %vm768 = vweird.f32 %v747
    %vm769 = vweird.f32 %v763
    %vm770 = vmor %vm768, %vm769
    %v771 = vsel %vm770, %v763, %v767
    %v772 = vand.u32 2147483647, %v747
    %vm773 = vcmp.eq.f32.partialorder %v772, 8.507059e+37
    %v774 = vand.u32 %v747, 2147483648
    %v775 = vor.u32 1.1754944e-38, %v774
    %v776 = vsel %vm773, %v775, %v771
    %v777 = vmul.f32 1.0, %v776
    %v780 = vrot.slane %v777, 7
    %vm781 = vcmask 1040384
    %v782 = vsel %vm781, %v762, %v780
    %v783 = vsel %vm177, %v762, %v780
    %v784 = vrot.slane %v783, 1
    %v785 = vperm.slane %v782, 0
    %v786 = vperm.slane %v782, 1
    %v787 = vperm.slane %v784, 0
    %v788 = vperm.slane %v784, 1
    %v793 = vmul.f32 %v337, %v785
    %v794 = vmul.f32 %v338, %v786
    %v795 = vmul.f32 %v339, %v785
    %v796 = vmul.f32 %v340, %v786
    %v797 = vmul.f32 %v341, %v785
    %v798 = vmul.f32 %v342, %v786
    %v799 = vmul.f32 %v343, %v785
    %v800 = vmul.f32 %v344, %v786
    %v801 = vmul.f32 %v345, %v787
    %v802 = vmul.f32 %v346, %v788
    %v803 = vmul.f32 %v347, %v787
    %v804 = vmul.f32 %v348, %v788
    %v805 = vmul.f32 %v349, %v787
    %v806 = vmul.f32 %v350, %v788
    %v807 = vmul.f32 %v351, %v787
    %v808 = vmul.f32 %v352, %v788
    %809 = vst [vmem:[#allocation8] sm:$0xff] %v793
    %810 = vst [vmem:[#allocation8 + $0x8] sm:$0xff] %v794
    %811 = vst [vmem:[#allocation8 + $0x10] sm:$0xff] %v795
    %812 = vst [vmem:[#allocation8 + $0x18] sm:$0xff] %v796
    %813 = vst [vmem:[#allocation8 + $0x20] sm:$0xff] %v797
    %814 = vst [vmem:[#allocation8 + $0x28] sm:$0xff] %v798
    %815 = vst [vmem:[#allocation8 + $0x30] sm:$0xff] %v799
    %816 = vst [vmem:[#allocation8 + $0x38] sm:$0xff] %v800
    %817 = vst [vmem:[#allocation8 + $0x40] sm:$0xff] %v801
    %818 = vst [vmem:[#allocation8 + $0x48] sm:$0xff] %v802
    %819 = vst [vmem:[#allocation8 + $0x50] sm:$0xff] %v803
    %820 = vst [vmem:[#allocation8 + $0x58] sm:$0xff] %v804
    %821 = vst [vmem:[#allocation8 + $0x60] sm:$0xff] %v805
    %822 = vst [vmem:[#allocation8 + $0x68] sm:$0xff] %v806
    %823 = vst [vmem:[#allocation8 + $0x70] sm:$0xff] %v807
    %824 = vst [vmem:[#allocation8 + $0x78] sm:$0xff] %v808
    // Predicated region
    $region34: #{tpu_custom_call.1} parent=1 // pred_check
      _
    $region35: #{tpu_custom_call.1} parent=1 // pred_check_branch
      %826 = sbr.rel (0) target = $region37
    $region36: #{tpu_custom_call.1} parent=1 // pred_region
      %828 = vsyncadd [#allocation4], 0
      %s829 = sshll.u32 [#allocation8], 4
      %s830 = int_to_ptr.vmem [resolvable:$true] %s829
      %s831 = sshll.u32 %s5, 4
      %s832 = int_to_ptr.hbm [resolvable:$true] %s831
      %837 = dma.vmem_to_hbm [thread:$0]  %s830, 2048, %s832, [#allocation4], 256, 256, 16
    $region37: #{tpu_custom_call.1} parent=1 // pred_fallthru
      _
    // Predicated region
    $region38: #{tpu_custom_call.1} parent=1 // pred_check
      _
    $region39: #{tpu_custom_call.1} parent=1 // pred_check_branch
      %839 = sbr.rel (0) target = $region41
    $region40: #{tpu_custom_call.1} parent=1 // pred_region
      %841 = dma.done [#allocation4], 2048
    $region41: #{tpu_custom_call.1} parent=1 // pred_fallthru
      _
    %842 = vsyncpa [#allocation3], 1
    %843 = vsyncpa [#allocation6], 1
    %844 = vsyncpa [#allocation4], 1

</llo_original>
